<compile_context>
chip_gen: v5e
topology: v5e:2x2
jax: 0.10.0
libtpu: 0.0.40
codegen_flags: <defaults>
</compile_context>

<pallas_src>
import jax
import jax.numpy as jnp
from jax import lax
from jax.experimental import pallas as pl
from jax.experimental.pallas import tpu as pltpu


def _round_up(a, b):
    return (a + b - 1) // b * b


def _moe_kernel(cls_ref, x_ref, wr_ref, br_ref, w1_ref, b1_ref, w2_ref, b2_ref,
                out_ref, wts_sc, acc_sc):
    # x_ref:   (1, TM, Dp) bf16 tokens
    # wr_ref:  (1, Dp, K)  bf16 router weights restricted to this token's class
    # br_ref:  (1, 1,  K)  f32 router bias (same restriction)
    # w1_ref:  (1, Dp, Hp) bf16 up-proj of the j-th allowed expert
    # b1_ref:  (1, 1,  Hp) f32
    # w2_ref:  (1, Hp, Dp) bf16 down-proj
    # b2_ref:  (1, 1,  Dp) f32
    # out_ref: (1, TM, Dp) f32  (written at the last expert step)
    # wts_sc:  (TM, K) f32 routing weights, acc_sc: (TM, Dp) f32 accumulator
    j = pl.program_id(2)
    x = x_ref[0]                                   # (TM, Dp) bf16

    @pl.when(j == 0)
    def _init():
        # Router restricted to the K allowed experts == the reference's masked
        # softmax over all E experts (masked experts get exactly 0 weight).
        logits = jnp.dot(x, wr_ref[0], preferred_element_type=jnp.float32)
        logits = logits + br_ref[0]
        m = jnp.max(logits, axis=-1, keepdims=True)
        e = jnp.exp(logits - m)
        denom = jnp.sum(e, axis=-1, keepdims=True)
        wts_sc[...] = e * pl.reciprocal(denom, approx=True)
        acc_sc[...] = jnp.zeros_like(acc_sc)

    # Expert j of the K allowed experts: bf16 MXU matmuls, f32 accumulation.
    h = jnp.dot(x, w1_ref[0], preferred_element_type=jnp.float32) + b1_ref[0]
    h = jax.nn.gelu(h, approximate=True)           # tanh-approx -> EUP (perf review)
    y = jnp.dot(h.astype(jnp.bfloat16), w2_ref[0],
                preferred_element_type=jnp.float32) + b2_ref[0]

    # Pick routing-weight column j without a dynamic lane slice (iota/select/sum).
    wts = wts_sc[...]                              # (TM, K)
    lane = lax.broadcasted_iota(jnp.int32, wts.shape, 1)
    w_j = jnp.sum(jnp.where(lane == j, wts, 0.0), axis=-1, keepdims=True)
    acc_sc[...] = acc_sc[...] + w_j * y

    @pl.when(j == pl.num_programs(2) - 1)
    def _finalize():
        out_ref[0] = acc_sc[...].astype(out_ref.dtype)


def moe_forward(x, class_label, params, *, num_experts, num_classes, tm=128):
    """x: (B, seq, D) f32, class_label: (B,) int. Returns ((B, seq, D), None)."""
    B, seq, D = x.shape
    E = num_experts
    assert E % num_classes == 0
    k = E // num_classes
    H = params["w1"].shape[-1]

    # Lane-dense feature dims; 16-aligned token tile (bf16 sublane packing).
    Dp = _round_up(D, 128)
    Hp = _round_up(H, 128)
    tm_eff = min(_round_up(tm, 16), _round_up(seq, 16))
    Sp = _round_up(seq, tm_eff)

    bf16, f32 = jnp.bfloat16, jnp.float32

    x_p = jnp.pad(x, ((0, 0), (0, Sp - seq), (0, Dp - D))).astype(bf16)

    # Group router columns by class: wr_g[c] = wr[:, c*k:(c+1)*k].
    wr_g = jnp.pad(params["wr"], ((0, Dp - D), (0, 0)))
    wr_g = wr_g.reshape(Dp, num_classes, k).transpose(1, 0, 2).astype(bf16)
    br_g = params["br"].reshape(1, num_classes, k).transpose(1, 0, 2).astype(f32)

    w1 = jnp.pad(params["w1"], ((0, 0), (0, Dp - D), (0, Hp - H))).astype(bf16)
    b1 = jnp.pad(params["b1"], ((0, 0), (0, 0), (0, Hp - H))).astype(f32)
    w2 = jnp.pad(params["w2"], ((0, 0), (0, Hp - H), (0, Dp - D))).astype(bf16)
    b2 = jnp.pad(params["b2"], ((0, 0), (0, 0), (0, Dp - D))).astype(f32)

    cls = class_label.astype(jnp.int32)

    grid = (B, Sp // tm_eff, k)

    # VMEM budget: double-buffered blocks + scratch + margin, capped for v7x.
    blk_bytes = (tm_eff * Dp * 2 + Dp * k * 2 + k * 4
                 + Dp * Hp * 2 + Hp * 4 + Hp * Dp * 2 + Dp * 4
                 + tm_eff * Dp * 4)
    scratch_bytes = tm_eff * 128 * 4 + tm_eff * Dp * 4
    vmem_limit = int(min(max(2 * blk_bytes + scratch_bytes + (2 << 20), 16 << 20),
                         64 << 20))

    n_tok = B * Sp
    cost = pl.CostEstimate(
        flops=int(2 * n_tok * Dp * k + 4 * n_tok * k * Dp * Hp),
        transcendentals=int(n_tok * k * Hp + n_tok * k),
        bytes_accessed=int(x_p.size * 2 + B * Sp * Dp * 4
                           + B * (Sp // tm_eff) * k * 2 * (Dp * Hp + Hp * Dp)),
    )

    out_p = pl.pallas_call(
        _moe_kernel,
        out_shape=jax.ShapeDtypeStruct((B, Sp, Dp), x.dtype),
        grid_spec=pltpu.PrefetchScalarGridSpec(
            num_scalar_prefetch=1,
            grid=grid,
            in_specs=[
                pl.BlockSpec((1, tm_eff, Dp), lambda b, s, j, c: (b, s, 0)),       # x
                pl.BlockSpec((1, Dp, k),      lambda b, s, j, c: (c[b], 0, 0)),    # router W (class slice)
                pl.BlockSpec((1, 1, k),       lambda b, s, j, c: (c[b], 0, 0)),    # router b
                pl.BlockSpec((1, Dp, Hp),     lambda b, s, j, c: (c[b] * k + j, 0, 0)),  # W1[e]
                pl.BlockSpec((1, 1, Hp),      lambda b, s, j, c: (c[b] * k + j, 0, 0)),  # b1[e]
                pl.BlockSpec((1, Hp, Dp),     lambda b, s, j, c: (c[b] * k + j, 0, 0)),  # W2[e]
                pl.BlockSpec((1, 1, Dp),      lambda b, s, j, c: (c[b] * k + j, 0, 0)),  # b2[e]
            ],
            out_specs=pl.BlockSpec((1, tm_eff, Dp), lambda b, s, j, c: (b, s, 0)),
            scratch_shapes=[pltpu.VMEM((tm_eff, k), jnp.float32),
                            pltpu.VMEM((tm_eff, Dp), jnp.float32)],
        ),
        compiler_params=pltpu.CompilerParams(
            dimension_semantics=("parallel", "parallel", "arbitrary"),
            vmem_limit_bytes=vmem_limit),
        cost_estimate=cost,
    )(cls, x_p, wr_g, br_g, w1, b1, w2, b2)

    out = out_p[:, :seq, :D]
    # TODO(synk): training-mode load-balance loss not implemented (eval mode).
    return out, None


def _reference(x, class_label, params, *, num_experts, num_classes):
    """Pure-JAX f32 reference mirroring the PyTorch forward (eval mode)."""
    E = num_experts
    expert_index = jnp.repeat(jnp.arange(num_classes, dtype=jnp.int32),
                              E // num_classes)
    allowed = expert_index[None, :] == class_label[:, None]            # (B, E)
    logits = jnp.einsum("bsd,de->bse", x, params["wr"]) + params["br"][0]
    logits = jnp.where(allowed[:, None, :], logits, -jnp.inf)
    weights = jax.nn.softmax(logits, axis=-1)
    out = jnp.zeros_like(x)
    for i in range(E):
        h = jnp.einsum("bsd,dh->bsh", x, params["w1"][i]) + params["b1"][i, 0]
        h = jax.nn.gelu(h, approximate=False)
        y = jnp.einsum("bsh,hd->bsd", h, params["w2"][i]) + params["b2"][i, 0]
        out = out + weights[..., i:i + 1] * y
    return out


def init_params(key, embed_dim, mlp_scale, num_experts):
    D, H, E = embed_dim, embed_dim * mlp_scale, num_experts
    ks = jax.random.split(key, 6)
    s = 0.02
    return {
        "wr": (s * jax.random.normal(ks[0], (D, E))).astype(jnp.float32),
        "br": (s * jax.random.normal(ks[1], (1, E))).astype(jnp.float32),
        "w1": (s * jax.random.normal(ks[2], (E, D, H))).astype(jnp.float32),
        "b1": (s * jax.random.normal(ks[3], (E, 1, H))).astype(jnp.float32),
        "w2": (s * jax.random.normal(ks[4], (E, H, D))).astype(jnp.float32),
        "b2": (s * jax.random.normal(ks[5], (E, 1, D))).astype(jnp.float32),
    }


if __name__ == "__main__":
    B, seq, embed_dim = 2, 8, 32
    mlp_scale, num_experts, num_classes = 2, 4, 2

    key = jax.random.PRNGKey(0)
    kx, kc, kp = jax.random.split(key, 3)
    x = jax.random.normal(kx, (B, seq, embed_dim), dtype=jnp.float32)
    class_label = jax.random.randint(kc, (B,), 0, num_classes, dtype=jnp.int32)
    params = init_params(kp, embed_dim, mlp_scale, num_experts)

    out, load_balance = moe_forward(x, class_label, params,
                                    num_experts=num_experts,
                                    num_classes=num_classes, tm=128)
    out = jax.block_until_ready(out)

    ref = _reference(x, class_label, params,
                     num_experts=num_experts, num_classes=num_classes)
    assert out.shape == (B, seq, embed_dim)
    # bf16 matmul inputs + approx gelu/reciprocal -> loosened tolerance vs f32 ref.
    max_err = float(jnp.max(jnp.abs(out - ref)))
    assert jnp.allclose(out, ref, atol=3e-3, rtol=3e-2), f"mismatch: {max_err}"
    print("KERNEL_OK")
</pallas_src>

<mosaic_0001>
module attributes {stable_mosaic.version = 11 : i64} {
  func.func @_moe_kernel(%arg0: i32, %arg1: i32, %arg2: i32, %arg3: memref<2xi32, #tpu.memory_space<smem>>, %arg4: memref<1x16x128xbf16, #tpu.memory_space<vmem>>, %arg5: memref<1x128x2xbf16, #tpu.memory_space<vmem>>, %arg6: memref<1x1x2xf32, #tpu.memory_space<vmem>>, %arg7: memref<1x128x128xbf16, #tpu.memory_space<vmem>>, %arg8: memref<1x1x128xf32, #tpu.memory_space<vmem>>, %arg9: memref<1x128x128xbf16, #tpu.memory_space<vmem>>, %arg10: memref<1x1x128xf32, #tpu.memory_space<vmem>>, %arg11: memref<1x16x128xf32, #tpu.memory_space<vmem>>, %arg12: memref<16x2xf32, #tpu.memory_space<vmem>>, %arg13: memref<16x128xf32, #tpu.memory_space<vmem>>) attributes {dimension_semantics = [#tpu.dimension_semantics<parallel>, #tpu.dimension_semantics<parallel>, #tpu.dimension_semantics<arbitrary>], iteration_bounds = array<i64: 2, 1, 2>, scalar_prefetch = 1 : i64, scratch_operands = 2 : i64, tpu.core_type = #tpu.core_type<tc>, window_params = [{transform_indices = @transform_0, window_bounds = array<i64: 1, 16, 128>}, {transform_indices = @transform_1, window_bounds = array<i64: 1, 128, 2>}, {transform_indices = @transform_2, window_bounds = array<i64: 1, 1, 2>}, {transform_indices = @transform_3, window_bounds = array<i64: 1, 128, 128>}, {transform_indices = @transform_4, window_bounds = array<i64: 1, 1, 128>}, {transform_indices = @transform_5, window_bounds = array<i64: 1, 128, 128>}, {transform_indices = @transform_6, window_bounds = array<i64: 1, 1, 128>}, {transform_indices = @transform_7, window_bounds = array<i64: 1, 16, 128>}]} {
    %c0 = arith.constant 0 : index
    %c0_0 = arith.constant 0 : index
    %c0_1 = arith.constant 0 : index
    %0 = vector.load %arg4[%c0, %c0_0, %c0_1] : memref<1x16x128xbf16, #tpu.memory_space<vmem>>, vector<1x16x128xbf16>
    %1 = vector.shape_cast %0 : vector<1x16x128xbf16> to vector<16x128xbf16>
    %c0_i32 = arith.constant 0 : i32
    %2 = arith.cmpi eq, %arg2, %c0_i32 : i32
    %3 = arith.extui %2 : i1 to i32
    %c0_i32_2 = arith.constant 0 : i32
    %4 = arith.cmpi ne, %3, %c0_i32_2 : i32
    scf.if %4 {
      %c0_29 = arith.constant 0 : index
      %c0_30 = arith.constant 0 : index
      %c0_31 = arith.constant 0 : index
      %49 = vector.load %arg5[%c0_29, %c0_30, %c0_31] : memref<1x128x2xbf16, #tpu.memory_space<vmem>>, vector<1x128x2xbf16>
      %50 = vector.shape_cast %49 : vector<1x128x2xbf16> to vector<128x2xbf16>
      %cst_32 = arith.constant dense<0.000000e+00> : vector<16x2xf32>
      %51 = tpu.matmul %1, %50, %cst_32 {dimension_numbers = #tpu.dot_dimension_numbers<[1], [0], [0], [1], [0, 0, 1, 1], [], []>} : vector<16x128xbf16>, vector<128x2xbf16>, vector<16x2xf32> -> vector<16x2xf32>
      %c0_33 = arith.constant 0 : index
      %c0_34 = arith.constant 0 : index
      %c0_35 = arith.constant 0 : index
      %52 = vector.load %arg6[%c0_33, %c0_34, %c0_35] : memref<1x1x2xf32, #tpu.memory_space<vmem>>, vector<1x1x2xf32>
      %53 = vector.shape_cast %52 : vector<1x1x2xf32> to vector<1x2xf32>
      %54 = vector.broadcast %53 : vector<1x2xf32> to vector<16x2xf32>
      %55 = arith.addf %51, %54 : vector<16x2xf32>
      %cst_36 = arith.constant dense<0xFF800000> : vector<16xf32>
      %56 = vector.multi_reduction <maximumf>, %55, %cst_36 [1] : vector<16x2xf32> to vector<16xf32>
      %57 = vector.shape_cast %56 : vector<16xf32> to vector<16x1xf32>
      %58 = vector.broadcast %57 : vector<16x1xf32> to vector<16x2xf32>
      %59 = arith.subf %55, %58 : vector<16x2xf32>
      %60 = math.exp %59 : vector<16x2xf32>
      %cst_37 = arith.constant dense<0.000000e+00> : vector<16xf32>
      %61 = vector.multi_reduction <add>, %60, %cst_37 [1] : vector<16x2xf32> to vector<16xf32>
      %62 = vector.shape_cast %61 : vector<16xf32> to vector<16x1xf32>
      %63 = tpu.reciprocal %62 {approx = true} : vector<16x1xf32> -> vector<16x1xf32>
      %64 = vector.broadcast %63 : vector<16x1xf32> to vector<16x2xf32>
      %65 = arith.mulf %60, %64 : vector<16x2xf32>
      %c0_38 = arith.constant 0 : index
      %c0_39 = arith.constant 0 : index
      %66 = vector.load %arg12[%c0_38, %c0_39] : memref<16x2xf32, #tpu.memory_space<vmem>>, vector<16x2xf32>
      tpu.vector_store %arg12[%c0_38, %c0_39], %65 {strides = array<i32>} : memref<16x2xf32, #tpu.memory_space<vmem>>, vector<16x2xf32>,
      %cst_40 = arith.constant 0.000000e+00 : f32
      %67 = vector.broadcast %cst_40 : f32 to vector<16x128xf32>
      %c0_41 = arith.constant 0 : index
      %c0_42 = arith.constant 0 : index
      %68 = vector.load %arg13[%c0_41, %c0_42] : memref<16x128xf32, #tpu.memory_space<vmem>>, vector<16x128xf32>
      tpu.vector_store %arg13[%c0_41, %c0_42], %67 {strides = array<i32>} : memref<16x128xf32, #tpu.memory_space<vmem>>, vector<16x128xf32>,
    } else {
    }
    %c0_3 = arith.constant 0 : index
    %c0_4 = arith.constant 0 : index
    %c0_5 = arith.constant 0 : index
    %5 = vector.load %arg7[%c0_3, %c0_4, %c0_5] : memref<1x128x128xbf16, #tpu.memory_space<vmem>>, vector<1x128x128xbf16>
    %6 = vector.shape_cast %5 : vector<1x128x128xbf16> to vector<128x128xbf16>
    %cst = arith.constant dense<0.000000e+00> : vector<16x128xf32>
    %7 = tpu.matmul %1, %6, %cst {dimension_numbers = #tpu.dot_dimension_numbers<[1], [0], [0], [1], [0, 0, 1, 1], [], []>} : vector<16x128xbf16>, vector<128x128xbf16>, vector<16x128xf32> -> vector<16x128xf32>
    %c0_6 = arith.constant 0 : index
    %c0_7 = arith.constant 0 : index
    %c0_8 = arith.constant 0 : index
    %8 = vector.load %arg8[%c0_6, %c0_7, %c0_8] : memref<1x1x128xf32, #tpu.memory_space<vmem>>, vector<1x1x128xf32>
    %9 = vector.shape_cast %8 : vector<1x1x128xf32> to vector<1x128xf32>
    %10 = vector.broadcast %9 : vector<1x128xf32> to vector<16x128xf32>
    %11 = arith.addf %7, %10 : vector<16x128xf32>
    %12 = arith.mulf %11, %11 : vector<16x128xf32>
    %13 = arith.mulf %11, %12 : vector<16x128xf32>
    %cst_9 = arith.constant 4.471500e-02 : f32
    %14 = vector.broadcast %cst_9 : f32 to vector<16x128xf32>
    %15 = arith.mulf %14, %13 : vector<16x128xf32>
    %16 = arith.addf %11, %15 : vector<16x128xf32>
    %cst_10 = arith.constant 0.797884583 : f32
    %17 = vector.broadcast %cst_10 : f32 to vector<16x128xf32>
    %18 = arith.mulf %17, %16 : vector<16x128xf32>
    %19 = math.tanh %18 : vector<16x128xf32>
    %cst_11 = arith.constant 1.000000e+00 : f32
    %20 = vector.broadcast %cst_11 : f32 to vector<16x128xf32>
    %21 = arith.addf %20, %19 : vector<16x128xf32>
    %cst_12 = arith.constant 5.000000e-01 : f32
    %22 = vector.broadcast %cst_12 : f32 to vector<16x128xf32>
    %23 = arith.mulf %22, %21 : vector<16x128xf32>
    %24 = arith.mulf %11, %23 : vector<16x128xf32>
    %25 = arith.truncf %24 : vector<16x128xf32> to vector<16x128xbf16>
    %c0_13 = arith.constant 0 : index
    %c0_14 = arith.constant 0 : index
    %c0_15 = arith.constant 0 : index
    %26 = vector.load %arg9[%c0_13, %c0_14, %c0_15] : memref<1x128x128xbf16, #tpu.memory_space<vmem>>, vector<1x128x128xbf16>
    %27 = vector.shape_cast %26 : vector<1x128x128xbf16> to vector<128x128xbf16>
    %cst_16 = arith.constant dense<0.000000e+00> : vector<16x128xf32>
    %28 = tpu.matmul %25, %27, %cst_16 {dimension_numbers = #tpu.dot_dimension_numbers<[1], [0], [0], [1], [0, 0, 1, 1], [], []>} : vector<16x128xbf16>, vector<128x128xbf16>, vector<16x128xf32> -> vector<16x128xf32>
    %c0_17 = arith.constant 0 : index
    %c0_18 = arith.constant 0 : index
    %c0_19 = arith.constant 0 : index
    %29 = vector.load %arg10[%c0_17, %c0_18, %c0_19] : memref<1x1x128xf32, #tpu.memory_space<vmem>>, vector<1x1x128xf32>
    %30 = vector.shape_cast %29 : vector<1x1x128xf32> to vector<1x128xf32>
    %31 = vector.broadcast %30 : vector<1x128xf32> to vector<16x128xf32>
    %32 = arith.addf %28, %31 : vector<16x128xf32>
    %c0_20 = arith.constant 0 : index
    %c0_21 = arith.constant 0 : index
    %33 = vector.load %arg12[%c0_20, %c0_21] : memref<16x2xf32, #tpu.memory_space<vmem>>, vector<16x2xf32>
    %34 = tpu.iota {dimensions = array<i32: 1>} : vector<16x2xi32>
    %35 = vector.broadcast %arg2 : i32 to vector<16x2xi32>
    %36 = arith.cmpi eq, %34, %35 : vector<16x2xi32>
    %cst_22 = arith.constant 0.000000e+00 : f32
    %37 = vector.broadcast %cst_22 : f32 to vector<16x2xf32>
    %38 = arith.select %36, %33, %37 : vector<16x2xi1>, vector<16x2xf32>
    %cst_23 = arith.constant dense<0.000000e+00> : vector<16xf32>
    %39 = vector.multi_reduction <add>, %38, %cst_23 [1] : vector<16x2xf32> to vector<16xf32>
    %40 = vector.shape_cast %39 : vector<16xf32> to vector<16x1xf32>
    %c0_24 = arith.constant 0 : index
    %c0_25 = arith.constant 0 : index
    %41 = vector.load %arg13[%c0_24, %c0_25] : memref<16x128xf32, #tpu.memory_space<vmem>>, vector<16x128xf32>
    %42 = vector.broadcast %40 : vector<16x1xf32> to vector<16x128xf32>
    %43 = arith.mulf %42, %32 : vector<16x128xf32>
    %44 = arith.addf %41, %43 : vector<16x128xf32>
    %c0_26 = arith.constant 0 : index
    %c0_27 = arith.constant 0 : index
    %45 = vector.load %arg13[%c0_26, %c0_27] : memref<16x128xf32, #tpu.memory_space<vmem>>, vector<16x128xf32>
    tpu.vector_store %arg13[%c0_26, %c0_27], %44 {strides = array<i32>} : memref<16x128xf32, #tpu.memory_space<vmem>>, vector<16x128xf32>,
    %c1_i32 = arith.constant 1 : i32
    %46 = arith.cmpi eq, %arg2, %c1_i32 : i32
    %47 = arith.extui %46 : i1 to i32
    %c0_i32_28 = arith.constant 0 : i32
    %48 = arith.cmpi ne, %47, %c0_i32_28 : i32
    scf.if %48 {
      %c0_29 = arith.constant 0 : index
      %c0_30 = arith.constant 0 : index
      %49 = vector.load %arg13[%c0_29, %c0_30] : memref<16x128xf32, #tpu.memory_space<vmem>>, vector<16x128xf32>
      %c0_31 = arith.constant 0 : index
      %c0_32 = arith.constant 0 : index
      %c0_33 = arith.constant 0 : index
      %50 = vector.load %arg11[%c0_31, %c0_32, %c0_33] : memref<1x16x128xf32, #tpu.memory_space<vmem>>, vector<1x16x128xf32>
      %51 = vector.shape_cast %50 : vector<1x16x128xf32> to vector<16x128xf32>
      %52 = vector.shape_cast %49 : vector<16x128xf32> to vector<1x16x128xf32>
      tpu.vector_store %arg11[%c0_31, %c0_32, %c0_33], %52 {strides = array<i32>} : memref<1x16x128xf32, #tpu.memory_space<vmem>>, vector<1x16x128xf32>,
    } else {
    }
    return
  }
  func.func @transform_0(%arg0: i32, %arg1: i32, %arg2: i32, %arg3: memref<2xi32, #tpu.memory_space<smem>>) -> (i32, i32, i32) {
    %c0_i32 = arith.constant 0 : i32
    %c0_i32_0 = arith.constant 0 : i32
    return %arg0, %arg1, %c0_i32 : i32, i32, i32
  }
  func.func @transform_1(%arg0: i32, %arg1: i32, %arg2: i32, %arg3: memref<2xi32, #tpu.memory_space<smem>>) -> (i32, i32, i32) {
    %0 = arith.index_cast %arg0 : i32 to index
    %1 = memref.load %arg3[%0] : memref<2xi32, #tpu.memory_space<smem>>
    %c0_i32 = arith.constant 0 : i32
    %c0_i32_0 = arith.constant 0 : i32
    %c0_i32_1 = arith.constant 0 : i32
    return %1, %c0_i32, %c0_i32_0 : i32, i32, i32
  }
  func.func @transform_2(%arg0: i32, %arg1: i32, %arg2: i32, %arg3: memref<2xi32, #tpu.memory_space<smem>>) -> (i32, i32, i32) {
    %0 = arith.index_cast %arg0 : i32 to index
    %1 = memref.load %arg3[%0] : memref<2xi32, #tpu.memory_space<smem>>
    %c0_i32 = arith.constant 0 : i32
    %c0_i32_0 = arith.constant 0 : i32
    %c0_i32_1 = arith.constant 0 : i32
    return %1, %c0_i32, %c0_i32_0 : i32, i32, i32
  }
  func.func @transform_3(%arg0: i32, %arg1: i32, %arg2: i32, %arg3: memref<2xi32, #tpu.memory_space<smem>>) -> (i32, i32, i32) {
    %0 = arith.index_cast %arg0 : i32 to index
    %1 = memref.load %arg3[%0] : memref<2xi32, #tpu.memory_space<smem>>
    %c2_i32 = arith.constant 2 : i32
    %2 = arith.muli %1, %c2_i32 : i32
    %3 = arith.addi %2, %arg2 : i32
    %c0_i32 = arith.constant 0 : i32
    %c0_i32_0 = arith.constant 0 : i32
    %c0_i32_1 = arith.constant 0 : i32
    return %3, %c0_i32, %c0_i32_0 : i32, i32, i32
  }
  func.func @transform_4(%arg0: i32, %arg1: i32, %arg2: i32, %arg3: memref<2xi32, #tpu.memory_space<smem>>) -> (i32, i32, i32) {
    %0 = arith.index_cast %arg0 : i32 to index
    %1 = memref.load %arg3[%0] : memref<2xi32, #tpu.memory_space<smem>>
    %c2_i32 = arith.constant 2 : i32
    %2 = arith.muli %1, %c2_i32 : i32
    %3 = arith.addi %2, %arg2 : i32
    %c0_i32 = arith.constant 0 : i32
    %c0_i32_0 = arith.constant 0 : i32
    %c0_i32_1 = arith.constant 0 : i32
    return %3, %c0_i32, %c0_i32_0 : i32, i32, i32
  }
  func.func @transform_5(%arg0: i32, %arg1: i32, %arg2: i32, %arg3: memref<2xi32, #tpu.memory_space<smem>>) -> (i32, i32, i32) {
    %0 = arith.index_cast %arg0 : i32 to index
    %1 = memref.load %arg3[%0] : memref<2xi32, #tpu.memory_space<smem>>
    %c2_i32 = arith.constant 2 : i32
    %2 = arith.muli %1, %c2_i32 : i32
    %3 = arith.addi %2, %arg2 : i32
    %c0_i32 = arith.constant 0 : i32
    %c0_i32_0 = arith.constant 0 : i32
    %c0_i32_1 = arith.constant 0 : i32
    return %3, %c0_i32, %c0_i32_0 : i32, i32, i32
  }
  func.func @transform_6(%arg0: i32, %arg1: i32, %arg2: i32, %arg3: memref<2xi32, #tpu.memory_space<smem>>) -> (i32, i32, i32) {
    %0 = arith.index_cast %arg0 : i32 to index
    %1 = memref.load %arg3[%0] : memref<2xi32, #tpu.memory_space<smem>>
    %c2_i32 = arith.constant 2 : i32
    %2 = arith.muli %1, %c2_i32 : i32
    %3 = arith.addi %2, %arg2 : i32
    %c0_i32 = arith.constant 0 : i32
    %c0_i32_0 = arith.constant 0 : i32
    %c0_i32_1 = arith.constant 0 : i32
    return %3, %c0_i32, %c0_i32_0 : i32, i32, i32
  }
  func.func @transform_7(%arg0: i32, %arg1: i32, %arg2: i32, %arg3: memref<2xi32, #tpu.memory_space<smem>>) -> (i32, i32, i32) {
    %c0_i32 = arith.constant 0 : i32
    %c0_i32_0 = arith.constant 0 : i32
    return %arg0, %arg1, %c0_i32 : i32, i32, i32
  }
}

</mosaic_0001>

<llo_original>
// kernel: tpu_custom_call.1
$region0: #{tpu_custom_call.1}
  #allocation0 [shape = 'u32[]', space=smem, size = 0x4, offset = 0x4, fixed_abs, tag = 'smem constant byte address 0x4 - core index']
  #allocation1 [shape = 'u32[72,128]{1,0:T(1,128)}', space=vmem, size = 0x9000, scoped, tag = 'internal scratch']
  #allocation2 [shape = 'f32[16,2]{1,0:T(8,128)}', space=vmem, size = 0x2000, scoped, tag = 'scratch operand']
  #allocation3 [shape = 'f32[16,128]{1,0:T(8,128)}', space=vmem, size = 0x2000, scoped, tag = 'scratch operand']
  #allocation4 [shape = 's32[1]{0}', space=sflag, size = 0x4, scoped, tag = 'scoped memory for tpu_custom_call.1']
  #allocation5 [shape = 'u8[512]{0}', space=smem, size = 0x200, scoped, tag = 'prefetched SMEM operand 0']
  %s0 = inlined_call_operand.vmem [shape: s32[2], index: 0, kind: input, shape index: {}]
  %s1 = inlined_call_operand.vmem [shape: bf16[2,16,128], index: 1, kind: input, shape index: {}]
  %s2 = inlined_call_operand.vmem [shape: bf16[2,128,2], index: 2, kind: input, shape index: {}]
  %s3 = inlined_call_operand.vmem [shape: f32[2,1,2], index: 3, kind: input, shape index: {}]
  %s4 = inlined_call_operand.hbm [shape: bf16[4,128,128], index: 4, kind: input, shape index: {}]
  %s5 = inlined_call_operand.vmem [shape: f32[4,1,128], index: 5, kind: input, shape index: {}]
  %s6 = inlined_call_operand.hbm [shape: bf16[4,128,128], index: 6, kind: input, shape index: {}]
  %s7 = inlined_call_operand.vmem [shape: f32[4,1,128], index: 7, kind: input, shape index: {}]
  %s8 = inlined_call_operand.hbm [shape: f32[2,16,128], index: 8, kind: output, shape index: {}]
  %s9 = sld [smem:[#allocation0]]
  $region77: #{tpu_custom_call.1} parent=0
    _
  %s11 = ssub.s32 1, %s9
  %s12 = scalar_select 0, %s11, %s9
  %s14 = sshll.u32 %s0, 4
  %s15 = int_to_ptr.vmem [resolvable:$true] %s14
  %17 = dma.vmem_to_smem %s15, 16, [#allocation5], [#allocation4]
  %19 = dma.done [#allocation4], 16
  %20 = sfence
  $region1: #{tpu_custom_call.1} parent=0
    #allocation6 [shape = 'u8[65536]{0}', space=vmem, size = 0x10000, scoped, tag = 'input window, operand 4']
    #allocation7 [shape = 's32[2]{0}', space=sflag, size = 0x8, scoped, tag = 'scoped memory for tpu_custom_call.1']
    #allocation8 [shape = 's32[2]{0}', space=sflag, size = 0x8, scoped, tag = 'scoped memory for tpu_custom_call.1']
    #allocation9 [shape = 'u8[65536]{0}', space=vmem, size = 0x10000, scoped, tag = 'input window, operand 6']
    #allocation10 [shape = 's32[2]{0}', space=sflag, size = 0x8, scoped, tag = 'scoped memory for tpu_custom_call.1']
    #allocation11 [shape = 'u8[16384]{0}', space=vmem, size = 0x4000, scoped, tag = 'output window, operand 0']
    %21 = vsyncpa [#allocation7], 0
    %s22 = scalar_lea.sflag [#allocation7], 1
    %23 = vsyncpa %s22, 0
    %24 = vsyncpa [#allocation10], 0
    %s25 = scalar_lea.sflag [#allocation10], 1
    %26 = vsyncpa %s25, 0
    %27 = vsyncpa [#allocation8], 0
    %s28 = scalar_lea.sflag [#allocation8], 1
    %29 = vsyncpa %s28, 0
    loop: start=0, step=1, limit=6
    $region2: #{tpu_custom_call.1} parent=1 // loop_pre_header
      _
    $region3: #{tpu_custom_call.1} parent=1 // loop_header
      %s31 = sphi 0, %s35
      %p32 = scmp.ge.s32.totalorder %s31, 6
      %s38 = sphi 0, %s57
      %s39 = sphi 0, %s53
      %s40 = sphi 0, %s49
      %s41 = sphi 0, %s38
      %s42 = sphi 0, %s39
      %s43 = sphi 0, %s40
      %s44 = sphi 0, %s41
      %s45 = sphi 0, %s42
      %s46 = sphi 0, %s43
      %s62 = sphi 0, %s64
      %s65 = sphi 0, %s62
      %s66 = sphi 0, %s65
      %s82 = sphi 0, %s66
      %s90 = sphi 0, %s92
      %s93 = sphi 0, %s90
      %s94 = sphi 0, %s93
      %s110 = sphi 0, %s94
      %s118 = sphi 0, %s120
      %s121 = sphi 0, %s118
      %s122 = sphi 0, %s121
      %s138 = sphi 0, %s122
      %s150 = sphi 0, %s152
      %s153 = sphi 0, %s150
      %s154 = sphi 0, %s153
      %s170 = sphi 0, %s154
      %s182 = sphi 0, %s184
      %s185 = sphi 0, %s182
      %s186 = sphi 0, %s185
      %s202 = sphi 0, %s186
      %s214 = sphi 0, %s216
      %s217 = sphi 0, %s214
      %s218 = sphi 0, %s217
      %s234 = sphi 0, %s218
      %s246 = sphi 0, %s248
      %s249 = sphi 0, %s246
      %s250 = sphi 0, %s249
      %s266 = sphi 0, %s250
      %s274 = sphi 0, %s276
      %s277 = sphi 0, %s274
      %s278 = sphi 0, %s277
      %s294 = sphi 0, %s278
    $region4: #{tpu_custom_call.1} parent=1 // loop_header_branch
      %34 = sbr.rel (%p32) target = $region8
    $region5: #{tpu_custom_call.1} parent=1 // loop_body
      %s36 = ssub.s32 %s31, 1
      %s37 = ssub.s32 %s31, 2
      %s47 = sadd.s32 1, %s40
      %p48 = scmp.ge.s32.totalorder %s47, 2
      %s49 = scalar_select %p48, 0, %s47
      %s50 = sadd.s32 1, %s39
      %s51 = scalar_select %p48, %s50, %s39
      %p52 = scmp.ge.s32.totalorder %s51, 1
      %s53 = scalar_select %p52, 0, %s51
      %s54 = sadd.s32 1, %s38
      %s55 = scalar_select %p52, %s54, %s38
      %p56 = scmp.ge.s32.totalorder %s55, 2
      %s57 = scalar_select %p56, 0, %s55
      %s58 = ssub.s32 %s38, %s57
      %s59 = ssub.s32 %s39, %s53
      %s60 = sor.u32 %s58, %s59
      %p61 = scmp.eq.s32.totalorder %s60, 0
      %s63 = sadd.s32 %s62, 1
      %s64 = scalar_select %p61, %s62, %s63
      %p67 = pneg %p61
      %p68 = scmp.eq.s32.totalorder %s31, 3
      %p69 = por %p67, %p68
      %p70 = scmp.ne.s32.totalorder %s62, %s65
      %p71 = scmp.eq.s32.totalorder %s31, 0
      %p72 = por %p70, %p71
      %p73 = scmp.ne.s32.totalorder %s62, %s65
      %p74 = scmp.eq.s32.totalorder %s36, 3
      %p75 = por %p73, %p74
      %p76 = scmp.ne.s32.totalorder %s65, %s66
      %p77 = scmp.eq.s32.totalorder %s36, 0
      %p78 = por %p76, %p77
      %p79 = scmp.ne.s32.totalorder %s65, %s66
      %p80 = scmp.eq.s32.totalorder %s37, 3
      %p81 = por %p79, %p80
      %p83 = scmp.ne.s32.totalorder %s66, %s82
      %p84 = scmp.eq.s32.totalorder %s37, 0
      %p85 = por %p83, %p84
      %s86 = sld [smem:[#allocation5 + %s38]]
      %s87 = sld [smem:[#allocation5 + %s57]]
      %s88 = ssub.s32 %s86, %s87
      %p89 = scmp.eq.s32.totalorder %s88, 0
      %s91 = sadd.s32 %s90, 1
      %s92 = scalar_select %p89, %s90, %s91
      %p95 = pneg %p89
      %p96 = scmp.eq.s32.totalorder %s31, 3
      %p97 = por %p95, %p96
      %p98 = scmp.ne.s32.totalorder %s90, %s93
      %p99 = scmp.eq.s32.totalorder %s31, 0
      %p100 = por %p98, %p99
      %p101 = scmp.ne.s32.totalorder %s90, %s93
      %p102 = scmp.eq.s32.totalorder %s36, 3
      %p103 = por %p101, %p102
      %p104 = scmp.ne.s32.totalorder %s93, %s94
      %p105 = scmp.eq.s32.totalorder %s36, 0
      %p106 = por %p104, %p105
      %p107 = scmp.ne.s32.totalorder %s93, %s94
      %p108 = scmp.eq.s32.totalorder %s37, 3
      %p109 = por %p107, %p108
      %p111 = scmp.ne.s32.totalorder %s94, %s110
      %p112 = scmp.eq.s32.totalorder %s37, 0
      %p113 = por %p111, %p112
      %s114 = sld [smem:[#allocation5 + %s38]]
      %s115 = sld [smem:[#allocation5 + %s57]]
      %s116 = ssub.s32 %s114, %s115
      %p117 = scmp.eq.s32.totalorder %s116, 0
      %s119 = sadd.s32 %s118, 1
      %s120 = scalar_select %p117, %s118, %s119
      %p123 = pneg %p117
      %p124 = scmp.eq.s32.totalorder %s31, 3
      %p125 = por %p123, %p124
      %p126 = scmp.ne.s32.totalorder %s118, %s121
      %p127 = scmp.eq.s32.totalorder %s31, 0
      %p128 = por %p126, %p127
      %p129 = scmp.ne.s32.totalorder %s118, %s121
      %p130 = scmp.eq.s32.totalorder %s36, 3
      %p131 = por %p129, %p130
      %p132 = scmp.ne.s32.totalorder %s121, %s122
      %p133 = scmp.eq.s32.totalorder %s36, 0
      %p134 = por %p132, %p133
      %p135 = scmp.ne.s32.totalorder %s121, %s122
      %p136 = scmp.eq.s32.totalorder %s37, 3
      %p137 = por %p135, %p136
      %p139 = scmp.ne.s32.totalorder %s122, %s138
      %p140 = scmp.eq.s32.totalorder %s37, 0
      %p141 = por %p139, %p140
      %s142 = sld [smem:[#allocation5 + %s38]]
      %s143 = smul.u32 %s142, 2
      %s144 = sadd.s32 %s143, %s40
      %s145 = sld [smem:[#allocation5 + %s57]]
      %s146 = smul.u32 %s145, 2
      %s147 = sadd.s32 %s146, %s49
      %s148 = ssub.s32 %s144, %s147
      %p149 = scmp.eq.s32.totalorder %s148, 0
      %s151 = sadd.s32 %s150, 1
      %s152 = scalar_select %p149, %s150, %s151
      %p155 = pneg %p149
      %p156 = scmp.eq.s32.totalorder %s31, 3
      %p157 = por %p155, %p156
      %p158 = scmp.ne.s32.totalorder %s150, %s153
      %p159 = scmp.eq.s32.totalorder %s31, 0
      %p160 = por %p158, %p159
      %p161 = scmp.ne.s32.totalorder %s150, %s153
      %p162 = scmp.eq.s32.totalorder %s36, 3
      %p163 = por %p161, %p162
      %p164 = scmp.ne.s32.totalorder %s153, %s154
      %p165 = scmp.eq.s32.totalorder %s36, 0
      %p166 = por %p164, %p165
      %p167 = scmp.ne.s32.totalorder %s153, %s154
      %p168 = scmp.eq.s32.totalorder %s37, 3
      %p169 = por %p167, %p168
      %p171 = scmp.ne.s32.totalorder %s154, %s170
      %p172 = scmp.eq.s32.totalorder %s37, 0
      %p173 = por %p171, %p172
      %s174 = sld [smem:[#allocation5 + %s38]]
      %s175 = smul.u32 %s174, 2
      %s176 = sadd.s32 %s175, %s40
      %s177 = sld [smem:[#allocation5 + %s57]]
      %s178 = smul.u32 %s177, 2
      %s179 = sadd.s32 %s178, %s49
      %s180 = ssub.s32 %s176, %s179
      %p181 = scmp.eq.s32.totalorder %s180, 0
      %s183 = sadd.s32 %s182, 1
      %s184 = scalar_select %p181, %s182, %s183
      %p187 = pneg %p181
      %p188 = scmp.eq.s32.totalorder %s31, 3
      %p189 = por %p187, %p188
      %p190 = scmp.ne.s32.totalorder %s182, %s185
      %p191 = scmp.eq.s32.totalorder %s31, 0
      %p192 = por %p190, %p191
      %p193 = scmp.ne.s32.totalorder %s182, %s185
      %p194 = scmp.eq.s32.totalorder %s36, 3
      %p195 = por %p193, %p194
      %p196 = scmp.ne.s32.totalorder %s185, %s186
      %p197 = scmp.eq.s32.totalorder %s36, 0
      %p198 = por %p196, %p197
      %p199 = scmp.ne.s32.totalorder %s185, %s186
      %p200 = scmp.eq.s32.totalorder %s37, 3
      %p201 = por %p199, %p200
      %p203 = scmp.ne.s32.totalorder %s186, %s202
      %p204 = scmp.eq.s32.totalorder %s37, 0
      %p205 = por %p203, %p204
      %s206 = sld [smem:[#allocation5 + %s38]]
      %s207 = smul.u32 %s206, 2
      %s208 = sadd.s32 %s207, %s40
      %s209 = sld [smem:[#allocation5 + %s57]]
      %s210 = smul.u32 %s209, 2
      %s211 = sadd.s32 %s210, %s49
      %s212 = ssub.s32 %s208, %s211
      %p213 = scmp.eq.s32.totalorder %s212, 0
      %s215 = sadd.s32 %s214, 1
      %s216 = scalar_select %p213, %s214, %s215
      %p219 = pneg %p213
      %p220 = scmp.eq.s32.totalorder %s31, 3
      %p221 = por %p219, %p220
      %p222 = scmp.ne.s32.totalorder %s214, %s217
      %p223 = scmp.eq.s32.totalorder %s31, 0
      %p224 = por %p222, %p223
      %p225 = scmp.ne.s32.totalorder %s214, %s217
      %p226 = scmp.eq.s32.totalorder %s36, 3
      %p227 = por %p225, %p226
      %p228 = scmp.ne.s32.totalorder %s217, %s218
      %p229 = scmp.eq.s32.totalorder %s36, 0
      %p230 = por %p228, %p229
      %p231 = scmp.ne.s32.totalorder %s217, %s218
      %p232 = scmp.eq.s32.totalorder %s37, 3
      %p233 = por %p231, %p232
      %p235 = scmp.ne.s32.totalorder %s218, %s234
      %p236 = scmp.eq.s32.totalorder %s37, 0
      %p237 = por %p235, %p236
      %s238 = sld [smem:[#allocation5 + %s38]]
      %s239 = smul.u32 %s238, 2
      %s240 = sadd.s32 %s239, %s40
      %s241 = sld [smem:[#allocation5 + %s57]]
      %s242 = smul.u32 %s241, 2
      %s243 = sadd.s32 %s242, %s49
      %s244 = ssub.s32 %s240, %s243
      %p245 = scmp.eq.s32.totalorder %s244, 0
      %s247 = sadd.s32 %s246, 1
      %s248 = scalar_select %p245, %s246, %s247
      %p251 = pneg %p245
      %p252 = scmp.eq.s32.totalorder %s31, 3
      %p253 = por %p251, %p252
      %p254 = scmp.ne.s32.totalorder %s246, %s249
      %p255 = scmp.eq.s32.totalorder %s31, 0
      %p256 = por %p254, %p255
      %p257 = scmp.ne.s32.totalorder %s246, %s249
      %p258 = scmp.eq.s32.totalorder %s36, 3
      %p259 = por %p257, %p258
      %p260 = scmp.ne.s32.totalorder %s249, %s250
      %p261 = scmp.eq.s32.totalorder %s36, 0
      %p262 = por %p260, %p261
      %p263 = scmp.ne.s32.totalorder %s249, %s250
      %p264 = scmp.eq.s32.totalorder %s37, 3
      %p265 = por %p263, %p264
      %p267 = scmp.ne.s32.totalorder %s250, %s266
      %p268 = scmp.eq.s32.totalorder %s37, 0
      %p269 = por %p267, %p268
      %s270 = ssub.s32 %s38, %s57
      %s271 = ssub.s32 %s39, %s53
      %s272 = sor.u32 %s270, %s271
      %p273 = scmp.eq.s32.totalorder %s272, 0
      %s275 = sadd.s32 %s274, 1
      %s276 = scalar_select %p273, %s274, %s275
      %p279 = pneg %p273
      %p280 = scmp.eq.s32.totalorder %s31, 3
      %p281 = por %p279, %p280
      %p282 = scmp.ne.s32.totalorder %s274, %s277
      %p283 = scmp.eq.s32.totalorder %s31, 0
      %p284 = por %p282, %p283
      %p285 = scmp.ne.s32.totalorder %s274, %s277
      %p286 = scmp.eq.s32.totalorder %s36, 3
      %p287 = por %p285, %p286
      %p288 = scmp.ne.s32.totalorder %s277, %s278
      %p289 = scmp.eq.s32.totalorder %s36, 0
      %p290 = por %p288, %p289
      %p291 = scmp.ne.s32.totalorder %s277, %s278
      %p292 = scmp.eq.s32.totalorder %s37, 3
      %p293 = por %p291, %p292
      %p295 = scmp.ne.s32.totalorder %s278, %s294
      %p296 = scmp.eq.s32.totalorder %s37, 0
      %p297 = por %p295, %p296
      %p298 = scmp.le.s32.totalorder 1, %s31
      %p299 = scmp.lt.s32.totalorder %s31, 5
      %p300 = pnand %p298, %p299
      %p301 = pneg %p300
      // Predicated region
      $region9: #{tpu_custom_call.1} parent=5 // pred_check
        _
      $region10: #{tpu_custom_call.1} parent=5 // pred_check_branch
        %303 = sbr.rel (%p300) target = $region12
      $region11: #{tpu_custom_call.1} parent=5 // pred_region
        %s304 = ssub.s32 %s31, 1
      $region12: #{tpu_custom_call.1} parent=5 // pred_fallthru
        _
      %p305 = scmp.lt.s32.totalorder %s31, 4
      // Predicated region
      $region13: #{tpu_custom_call.1} parent=5 // pred_check
        %p306 = pneg %p305
      $region14: #{tpu_custom_call.1} parent=5 // pred_check_branch
        %308 = sbr.rel (%p306) target = $region16
      $region15: #{tpu_custom_call.1} parent=5 // pred_region
        // Predicated region
        $region17: #{tpu_custom_call.1} parent=15 // pred_check
          %p309 = pneg %p72
        $region18: #{tpu_custom_call.1} parent=15 // pred_check_branch
          %311 = sbr.rel (%p309) target = $region20
        $region19: #{tpu_custom_call.1} parent=15 // pred_region
          %s312 = smul.u32 2, %s39
          %p313 = scmp.lt.s32.totalorder %s38, 1
          %s314 = scalar_select %p313, %s38, 1
          %p315 = scmp.lt.s32.totalorder %s312, 1
          %s316 = scalar_select %p315, %s312, 1
          %s317 = smul.addr %s314, 2
          %s318 = sadd.s32 %s316, %s317
          %s319 = smul.addr %s318, 4
          %s320 = scalar_lea.vmem %s1, %s319
          %s321 = smul.u32 2, %s39
        $region20: #{tpu_custom_call.1} parent=15 // pred_fallthru
          _
        // Predicated region
        $region21: #{tpu_custom_call.1} parent=15 // pred_check
          %p322 = pneg %p100
        $region22: #{tpu_custom_call.1} parent=15 // pred_check_branch
          %324 = sbr.rel (%p322) target = $region24
        $region23: #{tpu_custom_call.1} parent=15 // pred_region
          %s325 = sld [smem:[#allocation5 + %s38]]
          %p326 = scmp.lt.s32.totalorder %s325, 1
          %s327 = scalar_select %p326, %s325, 1
          %s328 = smul.addr %s327, 16
          %s329 = smul.addr %s328, 4
          %s330 = scalar_lea.vmem %s2, %s329
          %s331 = sld [smem:[#allocation5 + %s38]]
        $region24: #{tpu_custom_call.1} parent=15 // pred_fallthru
          _
        // Predicated region
        $region25: #{tpu_custom_call.1} parent=15 // pred_check
          %p332 = pneg %p128
        $region26: #{tpu_custom_call.1} parent=15 // pred_check_branch
          %334 = sbr.rel (%p332) target = $region28
        $region27: #{tpu_custom_call.1} parent=15 // pred_region
          %s335 = sld [smem:[#allocation5 + %s38]]
          %p336 = scmp.lt.s32.totalorder %s335, 1
          %s337 = scalar_select %p336, %s335, 1
          %s338 = scalar_lea.vmem %s3, %s337
          %s339 = sld [smem:[#allocation5 + %s38]]
        $region28: #{tpu_custom_call.1} parent=15 // pred_fallthru
          _
        // Predicated region
        $region29: #{tpu_custom_call.1} parent=15 // pred_check
          %p340 = pneg %p160
        $region30: #{tpu_custom_call.1} parent=15 // pred_check_branch
          %342 = sbr.rel (%p340) target = $region32
        $region31: #{tpu_custom_call.1} parent=15 // pred_region
          %s343 = sand.u32 %s150, 1
          %s344 = scalar_lea.sflag [#allocation7], %s343
          %s345 = sand.u32 %s150, 1
          %s346 = smul.addr %s345, 64
          %s347 = scalar_lea.vmem [#allocation6], %s346
          %s348 = sld [smem:[#allocation5 + %s38]]
          %s349 = smul.u32 %s348, 2
          %s350 = sadd.s32 %s349, %s40
          %352 = vsyncadd %s344, 0
          %s353 = smul.addr %s350, 16
          %s354 = smul.addr %s353, 4
          %s355 = scalar_lea.hbm %s4, %s354
          %s356 = sshll.u32 %s355, 4
          %s357 = int_to_ptr.hbm [resolvable:$true] %s356
          %s358 = sshll.u32 %s347, 4
          %s359 = int_to_ptr.vmem [resolvable:$true] %s358
          %364 = dma.hbm_to_vmem [thread:$0]  %s357, 1024, %s359, %s344, 64, 64, 4
        $region32: #{tpu_custom_call.1} parent=15 // pred_fallthru
          _
        // Predicated region
        $region33: #{tpu_custom_call.1} parent=15 // pred_check
          %p365 = pneg %p192
        $region34: #{tpu_custom_call.1} parent=15 // pred_check_branch
          %367 = sbr.rel (%p365) target = $region36
        $region35: #{tpu_custom_call.1} parent=15 // pred_region
          %s368 = sld [smem:[#allocation5 + %s38]]
          %s369 = smul.u32 %s368, 2
          %s370 = sadd.s32 %s369, %s40
          %p371 = scmp.lt.s32.totalorder %s370, 3
          %s372 = scalar_select %p371, %s370, 3
          %s373 = scalar_lea.vmem %s5, %s372
          %s374 = sld [smem:[#allocation5 + %s38]]
          %s375 = smul.u32 %s374, 2
          %s376 = sadd.s32 %s375, %s40
        $region36: #{tpu_custom_call.1} parent=15 // pred_fallthru
          _
        // Predicated region
        $region37: #{tpu_custom_call.1} parent=15 // pred_check
          %p377 = pneg %p224
        $region38: #{tpu_custom_call.1} parent=15 // pred_check_branch
          %379 = sbr.rel (%p377) target = $region40
        $region39: #{tpu_custom_call.1} parent=15 // pred_region
          %s380 = sand.u32 %s214, 1
          %s381 = scalar_lea.sflag [#allocation10], %s380
          %s382 = sand.u32 %s214, 1
          %s383 = smul.addr %s382, 64
          %s384 = scalar_lea.vmem [#allocation9], %s383
          %s385 = sld [smem:[#allocation5 + %s38]]
          %s386 = smul.u32 %s385, 2
          %s387 = sadd.s32 %s386, %s40
          %389 = vsyncadd %s381, 0
          %s390 = smul.addr %s387, 16
          %s391 = smul.addr %s390, 4
          %s392 = scalar_lea.hbm %s6, %s391
          %s393 = sshll.u32 %s392, 4
          %s394 = int_to_ptr.hbm [resolvable:$true] %s393
          %s395 = sshll.u32 %s384, 4
          %s396 = int_to_ptr.vmem [resolvable:$true] %s395
          %401 = dma.hbm_to_vmem [thread:$0]  %s394, 1024, %s396, %s381, 64, 64, 4
        $region40: #{tpu_custom_call.1} parent=15 // pred_fallthru
          _
        // Predicated region
        $region41: #{tpu_custom_call.1} parent=15 // pred_check
          %p402 = pneg %p256
        $region42: #{tpu_custom_call.1} parent=15 // pred_check_branch
          %404 = sbr.rel (%p402) target = $region44
        $region43: #{tpu_custom_call.1} parent=15 // pred_region
          %s405 = sld [smem:[#allocation5 + %s38]]
          %s406 = smul.u32 %s405, 2
          %s407 = sadd.s32 %s406, %s40
          %p408 = scmp.lt.s32.totalorder %s407, 3
          %s409 = scalar_select %p408, %s407, 3
          %s410 = scalar_lea.vmem %s7, %s409
          %s411 = sld [smem:[#allocation5 + %s38]]
          %s412 = smul.u32 %s411, 2
          %s413 = sadd.s32 %s412, %s40
        $region44: #{tpu_custom_call.1} parent=15 // pred_fallthru
          _
      $region16: #{tpu_custom_call.1} parent=5 // pred_fallthru
        _
      %p414 = scmp.le.s32.totalorder 1, %s31
      %p415 = scmp.lt.s32.totalorder %s31, 5
      %p416 = pnand %p414, %p415
      %p417 = pneg %p416
      // Predicated region
      $region45: #{tpu_custom_call.1} parent=5 // pred_check
        _
      $region46: #{tpu_custom_call.1} parent=5 // pred_check_branch
        %419 = sbr.rel (%p416) target = $region48
      $region47: #{tpu_custom_call.1} parent=5 // pred_region
        %s420 = ssub.s32 %s31, 1
        %s421 = sand.u32 %s153, 1
        %s422 = scalar_lea.sflag [#allocation7], %s421
        %s423 = sand.u32 %s153, 1
        %s424 = smul.addr %s423, 64
        %s425 = scalar_lea.vmem [#allocation6], %s424
        // Predicated region
        $region49: #{tpu_custom_call.1} parent=47 // pred_check
          %p426 = pneg %p166
        $region50: #{tpu_custom_call.1} parent=47 // pred_check_branch
          %428 = sbr.rel (%p426) target = $region52
        $region51: #{tpu_custom_call.1} parent=47 // pred_region
          %430 = dma.done %s422, 1024
        $region52: #{tpu_custom_call.1} parent=47 // pred_fallthru
          _
        %s431 = sand.u32 %s217, 1
        %s432 = scalar_lea.sflag [#allocation10], %s431
        %s433 = sand.u32 %s217, 1
        %s434 = smul.addr %s433, 64
        %s435 = scalar_lea.vmem [#allocation9], %s434
        // Predicated region
        $region53: #{tpu_custom_call.1} parent=47 // pred_check
          %p436 = pneg %p230
        $region54: #{tpu_custom_call.1} parent=47 // pred_check_branch
          %438 = sbr.rel (%p436) target = $region56
        $region55: #{tpu_custom_call.1} parent=47 // pred_region
          %440 = dma.done %s432, 1024
        $region56: #{tpu_custom_call.1} parent=47 // pred_fallthru
          _
        %s441 = smul.u32 2, %s42
        %p442 = scmp.lt.s32.totalorder %s41, 1
        %s443 = scalar_select %p442, %s41, 1
        %p444 = scmp.lt.s32.totalorder %s441, 1
        %s445 = scalar_select %p444, %s441, 1
        %s446 = smul.addr %s443, 2
        %s447 = sadd.s32 %s445, %s446
        %s448 = smul.addr %s447, 4
        %s449 = scalar_lea.vmem %s1, %s448
        %p450 = pneg %p78
        %p451 = pneg %p75
        %s452 = sld [smem:[#allocation5 + %s41]]
        %p453 = scmp.lt.s32.totalorder %s452, 1
        %s454 = scalar_select %p453, %s452, 1
        %s455 = smul.addr %s454, 16
        %s456 = smul.addr %s455, 4
        %s457 = scalar_lea.vmem %s2, %s456
        %p458 = pneg %p106
        %p459 = pneg %p103
        %s460 = sld [smem:[#allocation5 + %s41]]
        %p461 = scmp.lt.s32.totalorder %s460, 1
        %s462 = scalar_select %p461, %s460, 1
        %s463 = scalar_lea.vmem %s3, %s462
        %p464 = pneg %p134
        %p465 = pneg %p131
        %s466 = sand.u32 %s153, 1
        %s467 = scalar_lea.sflag [#allocation7], %s466
        %s468 = sand.u32 %s153, 1
        %s469 = smul.addr %s468, 64
        %s470 = scalar_lea.vmem [#allocation6], %s469
        %p471 = pneg %p166
        %p472 = pneg %p163
        %s473 = sld [smem:[#allocation5 + %s41]]
        %s474 = smul.u32 %s473, 2
        %s475 = sadd.s32 %s474, %s43
        %p476 = scmp.lt.s32.totalorder %s475, 3
        %s477 = scalar_select %p476, %s475, 3
        %s478 = scalar_lea.vmem %s5, %s477
        %p479 = pneg %p198
        %p480 = pneg %p195
        %s481 = sand.u32 %s217, 1
        %s482 = scalar_lea.sflag [#allocation10], %s481
        %s483 = sand.u32 %s217, 1
        %s484 = smul.addr %s483, 64
        %s485 = scalar_lea.vmem [#allocation9], %s484
        %p486 = pneg %p230
        %p487 = pneg %p227
        %s488 = sld [smem:[#allocation5 + %s41]]
        %s489 = smul.u32 %s488, 2
        %s490 = sadd.s32 %s489, %s43
        %p491 = scmp.lt.s32.totalorder %s490, 3
        %s492 = scalar_select %p491, %s490, 3
        %s493 = scalar_lea.vmem %s7, %s492
        %p494 = pneg %p262
        %p495 = pneg %p259
        %p496 = pneg %p290
        %p497 = pneg %p287
        %s498 = sand.u32 %s277, 1
        %s499 = scalar_lea.sflag [#allocation8], %s498
        %s500 = sand.u32 %s277, 1
        %s501 = smul.addr %s500, 16
        %s502 = scalar_lea.vmem [#allocation11], %s501
        %s503 = smul.u32 2, %s42
        %p504 = scmp.lt.s32.totalorder %s41, 1
        %s505 = scalar_select %p504, %s41, 1
        %p506 = scmp.lt.s32.totalorder %s503, 1
        %s507 = scalar_select %p506, %s503, 1
        %s508 = smul.addr %s505, 2
        %s509 = sadd.s32 %s507, %s508
        %s510 = smul.addr %s509, 4
        %s511 = scalar_lea.vmem %s1, %s510
        %s512 = smul.u32 2, %s42
        %s513 = sld [smem:[#allocation5 + %s41]]
        %p514 = scmp.lt.s32.totalorder %s513, 1
        %s515 = scalar_select %p514, %s513, 1
        %s516 = smul.addr %s515, 16
        %s517 = smul.addr %s516, 4
        %s518 = scalar_lea.vmem %s2, %s517
        %s519 = sld [smem:[#allocation5 + %s41]]
        %s520 = sld [smem:[#allocation5 + %s41]]
        %p521 = scmp.lt.s32.totalorder %s520, 1
        %s522 = scalar_select %p521, %s520, 1
        %s523 = scalar_lea.vmem %s3, %s522
        %s524 = sld [smem:[#allocation5 + %s41]]
        %s525 = sld [smem:[#allocation5 + %s41]]
        %s526 = smul.u32 %s525, 2
        %s527 = sadd.s32 %s526, %s43
        %s528 = sld [smem:[#allocation5 + %s41]]
        %s529 = smul.u32 %s528, 2
        %s530 = sadd.s32 %s529, %s43
        %p531 = scmp.lt.s32.totalorder %s530, 3
        %s532 = scalar_select %p531, %s530, 3
        %s533 = scalar_lea.vmem %s5, %s532
        %s534 = sld [smem:[#allocation5 + %s41]]
        %s535 = smul.u32 %s534, 2
        %s536 = sadd.s32 %s535, %s43
        %s537 = sld [smem:[#allocation5 + %s41]]
        %s538 = smul.u32 %s537, 2
        %s539 = sadd.s32 %s538, %s43
        %s540 = sld [smem:[#allocation5 + %s41]]
        %s541 = smul.u32 %s540, 2
        %s542 = sadd.s32 %s541, %s43
        %p543 = scmp.lt.s32.totalorder %s542, 3
        %s544 = scalar_select %p543, %s542, 3
        %s545 = scalar_lea.vmem %s7, %s544
        %s546 = sld [smem:[#allocation5 + %s41]]
        %s547 = smul.u32 %s546, 2
        %s548 = sadd.s32 %s547, %s43
        %s549 = smul.u32 2, %s42
        %v550 = vld [vmem:[%s511] sm:$0xf]
        %v551 = vld [vmem:[%s511 + $0x4] sm:$0xf]
        %p552 = scmp.eq.s32.totalorder %s43, 0
        // Predicated region
        $region57: #{tpu_custom_call.1} parent=47 // pred_check
          %p553 = pneg %p552
        $region58: #{tpu_custom_call.1} parent=47 // pred_check_branch
          %555 = sbr.rel (%p553) target = $region60
        $region59: #{tpu_custom_call.1} parent=47 // pred_region
          %v556 = vld [vmem:[%s518] sm:$0xf]
          %v557 = vld [vmem:[%s518 + $0x4] sm:$0xf]
          %v558 = vld [vmem:[%s518 + $0x8] sm:$0xf]
          %v559 = vld [vmem:[%s518 + $0xc] sm:$0xf]
          %v560 = vld [vmem:[%s518 + $0x10] sm:$0xf]
          %v561 = vld [vmem:[%s518 + $0x14] sm:$0xf]
          %v562 = vld [vmem:[%s518 + $0x18] sm:$0xf]
          %v563 = vld [vmem:[%s518 + $0x1c] sm:$0xf]
          %v564 = vld [vmem:[%s518 + $0x20] sm:$0xf]
          %v565 = vld [vmem:[%s518 + $0x24] sm:$0xf]
          %v566 = vld [vmem:[%s518 + $0x28] sm:$0xf]
          %v567 = vld [vmem:[%s518 + $0x2c] sm:$0xf]
          %v568 = vld [vmem:[%s518 + $0x30] sm:$0xf]
          %v569 = vld [vmem:[%s518 + $0x34] sm:$0xf]
          %v570 = vld [vmem:[%s518 + $0x38] sm:$0xf]
          %v571 = vld [vmem:[%s518 + $0x3c] sm:$0xf]
          %v572 = vld [vmem:[%s523] sm:$0x1]
          %v574 = vperm.slane %v572, 0
          %v578 = vunpack.c.l.b16 %v550
          %v579 = vunpack.c.l.b16 %v551
          %v580 = vpack.c.b16 %v579, %v578
          %v598 = vunpack.c.l.b16 %v556
          %v599 = vunpack.c.l.b16 %v557
          %v600 = vunpack.c.l.b16 %v558
          %v601 = vunpack.c.l.b16 %v559
          %v602 = vunpack.c.l.b16 %v560
          %v603 = vunpack.c.l.b16 %v561
          %v604 = vunpack.c.l.b16 %v562
          %v605 = vunpack.c.l.b16 %v563
          %v606 = vunpack.c.l.b16 %v564
          %v607 = vunpack.c.l.b16 %v565
          %v608 = vunpack.c.l.b16 %v566
          %v609 = vunpack.c.l.b16 %v567
          %v610 = vunpack.c.l.b16 %v568
          %v611 = vunpack.c.l.b16 %v569
          %v612 = vunpack.c.l.b16 %v570
          %v613 = vunpack.c.l.b16 %v571
          %v614 = vpack.c.b16 %v599, %v598
          %v615 = vpack.c.b16 %v601, %v600
          %v616 = vpack.c.b16 %v603, %v602
          %v617 = vpack.c.b16 %v605, %v604
          %v618 = vpack.c.b16 %v607, %v606
          %v619 = vpack.c.b16 %v609, %v608
          %v620 = vpack.c.b16 %v611, %v610
          %v621 = vpack.c.b16 %v613, %v612
          %630 = vmatpush.bf16.msra.mxu0 %v621
          %631 = vmatpush.bf16.msra.mxu0 %v620
          %632 = vmatpush.bf16.msra.mxu0 %v619
          %633 = vmatpush.bf16.msra.mxu0 %v618
          %634 = vmatpush.bf16.msra.mxu0 %v617
          %635 = vmatpush.bf16.msra.mxu0 %v616
          %636 = vmatpush.bf16.msra.mxu0 %v615
          %637 = vmatpush.bf16.msra.mxu0 %v614
          %638 = vmatmul.bf16.gmra.mxu0 %v580
          %v639 = vpop.f32.mrf.mxu0
          %v640 = vadd.f32 %v574, %v639
          %v641 = vpop.f32.mrf.mxu0
          %v642 = vadd.f32 %v574, %v641
          %643 = vdwg.mxu0
          %vm644 = vcmask 15360
          %v645 = vsel %vm644, %v640, -inf
          %646 = vmax.xlane.f32.xlu0 %v645
          %v647 = vpop.xlane.xlu0 %646
          %v648 = vsel %vm644, %v642, -inf
          %649 = vmax.xlane.f32.xlu0 %v648
          %v650 = vpop.xlane.xlu0 %649
          %v651 = vsub.f32 %v640, %v647
          %v652 = vsub.f32 %v642, %v650
          %v653 = vmul.f32 %v651, 1.442695
          %v654 = vpow.pop %v653
          %v655 = vmul.f32 %v652, 1.442695
          %v656 = vpow.pop %v655
          %v657 = vsel %vm644, %v654, 0.0
          %658 = vadd.xlane.f32.xlu0 %v657
          %v659 = vpop.xlane.xlu0 %658
          %v660 = vsel %vm644, %v656, 0.0
          %661 = vadd.xlane.f32.xlu0 %v660
          %v662 = vpop.xlane.xlu0 %661
          %v663 = vrcp.pop %v659
          %v664 = vrcp.pop %v662
          %v665 = vmul.f32 %v654, %v663
          %v666 = vmul.f32 %v656, %v664
          %667 = vst.msk [vmem:[#allocation2] sm:$0xff] %vm644, %v665
          %668 = vst.msk [vmem:[#allocation2 + $0x8] sm:$0xff] %vm644, %v666
          %669 = vst [vmem:[#allocation3] sm:$0xff] 0.0
          %670 = vst [vmem:[#allocation3 + $0x8] sm:$0xff] 0.0
        $region60: #{tpu_custom_call.1} parent=47 // pred_fallthru
          _
        %v671 = vld [vmem:[%s425] sm:$0xf]
        %v672 = vld [vmem:[%s425 + $0x4] sm:$0xf]
        %v673 = vld [vmem:[%s425 + $0x8] sm:$0xf]
        %v674 = vld [vmem:[%s425 + $0xc] sm:$0xf]
        %v675 = vld [vmem:[%s425 + $0x10] sm:$0xf]
        %v676 = vld [vmem:[%s425 + $0x14] sm:$0xf]
        %v677 = vld [vmem:[%s425 + $0x18] sm:$0xf]
        %v678 = vld [vmem:[%s425 + $0x1c] sm:$0xf]
        %v679 = vld [vmem:[%s425 + $0x20] sm:$0xf]
        %v680 = vld [vmem:[%s425 + $0x24] sm:$0xf]
        %v681 = vld [vmem:[%s425 + $0x28] sm:$0xf]
        %v682 = vld [vmem:[%s425 + $0x2c] sm:$0xf]
        %v683 = vld [vmem:[%s425 + $0x30] sm:$0xf]
        %v684 = vld [vmem:[%s425 + $0x34] sm:$0xf]
        %v685 = vld [vmem:[%s425 + $0x38] sm:$0xf]
        %v686 = vld [vmem:[%s425 + $0x3c] sm:$0xf]
        %v687 = vld [vmem:[%s533] sm:$0x1]
        %v689 = vperm.slane %v687, 0
        %v693 = vunpack.c.l.b16 %v550
        %v694 = vunpack.c.l.b16 %v551
        %v695 = vpack.c.b16 %v694, %v693
        %v713 = vunpack.c.l.b16 %v671
        %v714 = vunpack.c.l.b16 %v672
        %v715 = vunpack.c.l.b16 %v673
        %v716 = vunpack.c.l.b16 %v674
        %v717 = vunpack.c.l.b16 %v675
        %v718 = vunpack.c.l.b16 %v676
        %v719 = vunpack.c.l.b16 %v677
        %v720 = vunpack.c.l.b16 %v678
        %v721 = vunpack.c.l.b16 %v679
        %v722 = vunpack.c.l.b16 %v680
        %v723 = vunpack.c.l.b16 %v681
        %v724 = vunpack.c.l.b16 %v682
        %v725 = vunpack.c.l.b16 %v683
        %v726 = vunpack.c.l.b16 %v684
        %v727 = vunpack.c.l.b16 %v685
        %v728 = vunpack.c.l.b16 %v686
        %v729 = vpack.c.b16 %v714, %v713
        %v730 = vpack.c.b16 %v716, %v715
        %v731 = vpack.c.b16 %v718, %v717
        %v732 = vpack.c.b16 %v720, %v719
        %v733 = vpack.c.b16 %v722, %v721
        %v734 = vpack.c.b16 %v724, %v723
        %v735 = vpack.c.b16 %v726, %v725
        %v736 = vpack.c.b16 %v728, %v727
        %745 = vmatpush.bf16.msra.mxu0 %v736
        %746 = vmatpush.bf16.msra.mxu0 %v735
        %747 = vmatpush.bf16.msra.mxu0 %v734
        %748 = vmatpush.bf16.msra.mxu0 %v733
        %749 = vmatpush.bf16.msra.mxu0 %v732
        %750 = vmatpush.bf16.msra.mxu0 %v731
        %751 = vmatpush.bf16.msra.mxu0 %v730
        %752 = vmatpush.bf16.msra.mxu0 %v729
        %753 = vmatmul.bf16.gmra.mxu0 %v695
        %v754 = vpop.f32.mrf.mxu0
        %v755 = vadd.f32 %v689, %v754
        %v756 = vpop.f32.mrf.mxu0
        %v757 = vadd.f32 %v689, %v756
        %758 = vdwg.mxu0
        %v759 = vmul.f32 %v755, %v755
        %v760 = vmul.f32 %v757, %v757
        %v761 = vmul.f32 %v755, %v759
        %v762 = vmul.f32 %v757, %v760
        %v763 = vmul.f32 %v761, 0.044715
        %v764 = vmul.f32 %v762, 0.044715
        %v765 = vadd.f32 %v755, %v763
        %v766 = vadd.f32 %v757, %v764
        %v767 = vmul.f32 %v765, 0.7978846
        %v768 = vmul.f32 %v766, 0.7978846
        %v769 = vtanh.pop %v767
        %v770 = vtanh.pop %v768
        %v771 = vadd.f32 %v769, 1.0
        %v772 = vadd.f32 %v770, 1.0
        %v773 = vmul.f32 %v771, 0.5
        %v774 = vmul.f32 %v772, 0.5
        %v775 = vmul.f32 %v755, %v773
        %v776 = vmul.f32 %v757, %v774
        %v777 = vpack.c.bf16 %v776, %v775
        %v778 = vld [vmem:[%s435] sm:$0xf]
        %v779 = vld [vmem:[%s435 + $0x4] sm:$0xf]
        %v780 = vld [vmem:[%s435 + $0x8] sm:$0xf]
        %v781 = vld [vmem:[%s435 + $0xc] sm:$0xf]
        %v782 = vld [vmem:[%s435 + $0x10] sm:$0xf]
        %v783 = vld [vmem:[%s435 + $0x14] sm:$0xf]
        %v784 = vld [vmem:[%s435 + $0x18] sm:$0xf]
        %v785 = vld [vmem:[%s435 + $0x1c] sm:$0xf]
        %v786 = vld [vmem:[%s435 + $0x20] sm:$0xf]
        %v787 = vld [vmem:[%s435 + $0x24] sm:$0xf]
        %v788 = vld [vmem:[%s435 + $0x28] sm:$0xf]
        %v789 = vld [vmem:[%s435 + $0x2c] sm:$0xf]
        %v790 = vld [vmem:[%s435 + $0x30] sm:$0xf]
        %v791 = vld [vmem:[%s435 + $0x34] sm:$0xf]
        %v792 = vld [vmem:[%s435 + $0x38] sm:$0xf]
        %v793 = vld [vmem:[%s435 + $0x3c] sm:$0xf]
        %v794 = vld [vmem:[%s545] sm:$0x1]
        %v796 = vperm.slane %v794, 0
        %v814 = vunpack.c.l.b16 %v778
        %v815 = vunpack.c.l.b16 %v779
        %v816 = vunpack.c.l.b16 %v780
        %v817 = vunpack.c.l.b16 %v781
        %v818 = vunpack.c.l.b16 %v782
        %v819 = vunpack.c.l.b16 %v783
        %v820 = vunpack.c.l.b16 %v784
        %v821 = vunpack.c.l.b16 %v785
        %v822 = vunpack.c.l.b16 %v786
        %v823 = vunpack.c.l.b16 %v787
        %v824 = vunpack.c.l.b16 %v788
        %v825 = vunpack.c.l.b16 %v789
        %v826 = vunpack.c.l.b16 %v790
        %v827 = vunpack.c.l.b16 %v791
        %v828 = vunpack.c.l.b16 %v792
        %v829 = vunpack.c.l.b16 %v793
        %v830 = vpack.c.b16 %v815, %v814
        %v831 = vpack.c.b16 %v817, %v816
        %v832 = vpack.c.b16 %v819, %v818
        %v833 = vpack.c.b16 %v821, %v820
        %v834 = vpack.c.b16 %v823, %v822
        %v835 = vpack.c.b16 %v825, %v824
        %v836 = vpack.c.b16 %v827, %v826
        %v837 = vpack.c.b16 %v829, %v828
        %846 = vmatpush.bf16.msra.mxu0 %v837
        %847 = vmatpush.bf16.msra.mxu0 %v836
        %848 = vmatpush.bf16.msra.mxu0 %v835
        %849 = vmatpush.bf16.msra.mxu0 %v834
        %850 = vmatpush.bf16.msra.mxu0 %v833
        %851 = vmatpush.bf16.msra.mxu0 %v832
        %852 = vmatpush.bf16.msra.mxu0 %v831
        %853 = vmatpush.bf16.msra.mxu0 %v830
        %854 = vmatmul.bf16.gmra.mxu0 %v777
        %v855 = vpop.f32.mrf.mxu0
        %v856 = vadd.f32 %v796, %v855
        %v857 = vpop.f32.mrf.mxu0
        %v858 = vadd.f32 %v796, %v857
        %859 = vdwg.mxu0
        %v860 = vld [vmem:[#allocation2] sm:$0xff]
        %v861 = vld [vmem:[#allocation2 + $0x8] sm:$0xff]
        %v862 = vlaneseq
        %v863 = vand.u32 %v862, 127
        %v864 = vstv %s43
        %vm865 = vcmp.eq.s32.totalorder %v863, %v864
        %v866 = vsel %vm865, %v860, 0.0
        %v867 = vsel %vm865, %v861, 0.0
        %vm868 = vcmask 15360
        %v869 = vsel %vm868, %v866, 0.0
        %870 = vadd.xlane.f32.xlu0 %v869
        %v871 = vpop.xlane.xlu0 %870
        %v872 = vsel %vm868, %v867, 0.0
        %873 = vadd.xlane.f32.xlu0 %v872
        %v874 = vpop.xlane.xlu0 %873
        %v875 = vld [vmem:[#allocation3] sm:$0xff]
        %v876 = vld [vmem:[#allocation3 + $0x8] sm:$0xff]
        %v877 = vmul.f32 %v871, %v856
        %v878 = vmul.f32 %v874, %v858
        %v879 = vadd.f32 %v875, %v877
        %v880 = vadd.f32 %v876, %v878
        %881 = vst [vmem:[#allocation3] sm:$0xff] %v879
        %882 = vst [vmem:[#allocation3 + $0x8] sm:$0xff] %v880
        %p883 = scmp.eq.s32.totalorder %s43, 1
        // Predicated region
        $region61: #{tpu_custom_call.1} parent=47 // pred_check
          %p884 = pneg %p883
        $region62: #{tpu_custom_call.1} parent=47 // pred_check_branch
          %886 = sbr.rel (%p884) target = $region64
        $region63: #{tpu_custom_call.1} parent=47 // pred_region
          %v887 = vld [vmem:[#allocation3] sm:$0xff]
          %v888 = vld [vmem:[#allocation3 + $0x8] sm:$0xff]
          %889 = vst [vmem:[%s502] sm:$0xff] %v887
          %890 = vst [vmem:[%s502 + $0x8] sm:$0xff] %v888
        $region64: #{tpu_custom_call.1} parent=47 // pred_fallthru
          _
        %s891 = sand.u32 %s277, 1
        %s892 = scalar_lea.sflag [#allocation8], %s891
        %s893 = sand.u32 %s277, 1
        %s894 = smul.addr %s893, 16
        %s895 = scalar_lea.vmem [#allocation11], %s894
        // Predicated region
        $region65: #{tpu_custom_call.1} parent=47 // pred_check
          %p896 = pneg %p287
        $region66: #{tpu_custom_call.1} parent=47 // pred_check_branch
          %898 = sbr.rel (%p896) target = $region68
        $region67: #{tpu_custom_call.1} parent=47 // pred_region
          %s899 = smul.u32 2, %s42
          %901 = vsyncadd %s892, 0
          %s902 = smul.addr %s41, 2
          %s903 = sadd.s32 %s899, %s902
          %s904 = smul.addr %s903, 8
          %s905 = scalar_lea.hbm %s8, %s904
          %s906 = sshll.u32 %s895, 4
          %s907 = int_to_ptr.vmem [resolvable:$true] %s906
          %s908 = sshll.u32 %s905, 4
          %s909 = int_to_ptr.hbm [resolvable:$true] %s908
          %914 = dma.vmem_to_hbm [thread:$0]  %s907, 256, %s909, %s892, 128, 128, 8
        $region68: #{tpu_custom_call.1} parent=47 // pred_fallthru
          _
      $region48: #{tpu_custom_call.1} parent=5 // pred_fallthru
        _
      %p915 = scmp.le.s32.totalorder 2, %s31
      // Predicated region
      $region69: #{tpu_custom_call.1} parent=5 // pred_check
        %p916 = pneg %p915
      $region70: #{tpu_custom_call.1} parent=5 // pred_check_branch
        %918 = sbr.rel (%p916) target = $region72
      $region71: #{tpu_custom_call.1} parent=5 // pred_region
        %s919 = ssub.s32 %s31, 2
        // Predicated region
        $region73: #{tpu_custom_call.1} parent=71 // pred_check
          %p920 = pneg %p293
        $region74: #{tpu_custom_call.1} parent=71 // pred_check_branch
          %922 = sbr.rel (%p920) target = $region76
        $region75: #{tpu_custom_call.1} parent=71 // pred_region
          %s923 = sand.u32 %s278, 1
          %s924 = scalar_lea.sflag [#allocation8], %s923
          %s925 = sand.u32 %s278, 1
          %s926 = smul.addr %s925, 16
          %s927 = scalar_lea.vmem [#allocation11], %s926
          %929 = dma.done %s924, 256
        $region76: #{tpu_custom_call.1} parent=71 // pred_fallthru
          _
      $region72: #{tpu_custom_call.1} parent=5 // pred_fallthru
        _
    $region6: #{tpu_custom_call.1} parent=1 // loop_footer
      %s35 = sadd.s32 1, %s31
    $region7: #{tpu_custom_call.1} parent=1 // loop_footer_branch
      %30 = sbr.rel target = $region3
    $region8: #{tpu_custom_call.1} parent=1 // loop_exit
      _
    %930 = vsyncpa [#allocation7], 1
    %s931 = scalar_lea.sflag [#allocation7], 1
    %932 = vsyncpa %s931, 1
    %933 = vsyncpa [#allocation10], 1
    %s934 = scalar_lea.sflag [#allocation10], 1
    %935 = vsyncpa %s934, 1
    %936 = vsyncpa [#allocation8], 1
    %s937 = scalar_lea.sflag [#allocation8], 1
    %938 = vsyncpa %s937, 1

</llo_original>
